<compile_context>
chip_gen: v7x
topology: tpu7x:2x2x1
jax: 0.10.0
libtpu: 0.0.40
codegen_flags: <defaults>
</compile_context>

<pallas_src>
import functools

import jax
import jax.numpy as jnp
from jax.experimental import pallas as pl
from jax.experimental.pallas import tpu as pltpu

LANES = 128
SUBLANES = 8
MAX_BLOCK_ROWS = 4096   # 4096 * 128 * 4 B = 2 MiB per input per buffer


def _focal_kernel(x_ref, t_ref, tail_ref, out_ref, s1_ref, s2_ref, s3_ref,
                  *, rows, block_rows, num_steps, alpha, gamma):
    i = pl.program_id(0)

    @pl.when(i == 0)
    def _init():
        s1_ref[...] = jnp.zeros_like(s1_ref)
        s2_ref[...] = jnp.zeros_like(s2_ref)
        s3_ref[...] = jnp.zeros_like(s3_ref)

    grouped = (block_rows % SUBLANES) == 0

    def _tile_sum(v):
        if grouped:
            # Group sublanes into whole vregs: sum(axis=0) of (G,8,128) is
            # pure VPU vreg adds -- no per-step cross-sublane (XLU) reduce.
            return jnp.sum(v.reshape(block_rows // SUBLANES, SUBLANES, LANES),
                           axis=0)
        return jnp.sum(v, axis=0, keepdims=True)

    def _accumulate(masked):
        xf = x_ref[...].astype(jnp.float32)
        tf = t_ref[...].astype(jnp.float32)
        # sigmoid in explicit tanh form: one EUP op instead of exp+reciprocal.
        p = 0.5 * jnp.tanh(0.5 * xf) + 0.5
        # p in (0,1): shift by 1.0 keeps exp args in (-1,0) -> stable LSE with
        # no max pass.  Second (and last) EUP op per element.
        e = jnp.exp(p - 1.0)
        tp = tf * p
        if masked:
            # Only the ragged last block pays for the mask: rows read past the
            # array edge are garbage and must be zeroed before accumulation.
            row = jax.lax.broadcasted_iota(jnp.int32, (block_rows, LANES), 0)
            valid = (i * block_rows + row) < rows
            e = jnp.where(valid, e, 0.0)
            tp = jnp.where(valid, tp, 0.0)
            tf = jnp.where(valid, tf, 0.0)
        s1_ref[...] += _tile_sum(e)
        s2_ref[...] += _tile_sum(tp)
        s3_ref[...] += _tile_sum(tf)

    ragged = (rows % block_rows) != 0
    if not ragged:
        _accumulate(False)                 # static fast path: no mask anywhere
    else:
        if num_steps > 1:
            @pl.when(i < num_steps - 1)
            def _interior():
                _accumulate(False)         # unmasked interior blocks

        @pl.when(i == num_steps - 1)
        def _ragged_tail():
            _accumulate(True)              # masked path only for the tail block

    @pl.when(i == num_steps - 1)
    def _finalize():
        # Cross-sublane + cross-lane reduces happen exactly once, here.
        def _total(ref, tail):
            sub = jnp.sum(ref[...], axis=0, keepdims=True)       # (1, 128)
            return jnp.sum(sub, axis=1, keepdims=True) + tail    # (1, 1)

        s1 = _total(s1_ref, tail_ref[0])
        s2 = _total(s2_ref, tail_ref[1])
        s3 = _total(s3_ref, tail_ref[2])

        lse = 1.0 + jnp.log(s1)            # log-sum-exp with constant shift 1.0
        bce = lse * s3 - s2                # = -sum(t * log_softmax(p))
        bce_exp = jnp.exp(-bce)
        one_m = 1.0 - bce_exp
        mod = one_m * one_m if gamma == 2 else one_m ** gamma
        out_ref[...] = alpha * mod * bce


def focal_loss(inputs, targets, alpha=0.8, gamma=2):
    """Pallas TPU implementation of FocalLoss.forward. Returns a scalar f32."""
    x = inputs.reshape(-1)          # keep native dtype; cast inside the kernel
    t = targets.reshape(-1)
    k = x.shape[0]

    rows = k // LANES
    main = rows * LANES

    # <=127-element tail handled in plain JAX (no host-side pad copy of the
    # full inputs); its three partial sums are folded into the kernel epilogue.
    if main != k:
        xt = x[main:].astype(jnp.float32)
        tt = t[main:].astype(jnp.float32)
        pt = jax.nn.sigmoid(xt)
        tail = jnp.stack([jnp.sum(jnp.exp(pt - 1.0)),
                          jnp.sum(tt * pt),
                          jnp.sum(tt)])
    else:
        tail = jnp.zeros((3,), jnp.float32)

    if rows == 0:
        # Fewer than 128 elements: everything is "tail"; compute in plain JAX.
        s1, s2, s3 = tail[0], tail[1], tail[2]
        lse = 1.0 + jnp.log(s1)
        bce = lse * s3 - s2
        one_m = 1.0 - jnp.exp(-bce)
        mod = one_m * one_m if gamma == 2 else one_m ** gamma
        return jnp.asarray(alpha * mod * bce, jnp.float32)

    # Identity (no copy) when k is already lane-aligned.
    x2 = x[:main].reshape(rows, LANES)
    t2 = t[:main].reshape(rows, LANES)

    # Single block covering everything when it fits (block == full array dims
    # is always a legal BlockSpec); otherwise 4096-row (2 MiB) tiles.
    block_rows = rows if rows <= MAX_BLOCK_ROWS else MAX_BLOCK_ROWS
    num_steps = pl.cdiv(rows, block_rows)
    acc_rows = SUBLANES if block_rows % SUBLANES == 0 else 1

    kernel = functools.partial(
        _focal_kernel, rows=rows, block_rows=block_rows, num_steps=num_steps,
        alpha=float(alpha), gamma=gamma)

    out = pl.pallas_call(
        kernel,
        out_shape=jax.ShapeDtypeStruct((1, 1), jnp.float32),
        grid_spec=pltpu.PrefetchScalarGridSpec(
            num_scalar_prefetch=0,
            grid=(num_steps,),
            in_specs=[
                pl.BlockSpec((block_rows, LANES), lambda i: (i, 0)),
                pl.BlockSpec((block_rows, LANES), lambda i: (i, 0)),
                # Tiny (3,) f32 tail-sum vector, resident in SMEM.
                pl.BlockSpec(memory_space=pltpu.MemorySpace.SMEM),
            ],
            out_specs=pl.BlockSpec((1, 1), lambda i: (0, 0)),
            scratch_shapes=[pltpu.VMEM((acc_rows, LANES), jnp.float32)] * 3,
        ),
        compiler_params=pltpu.CompilerParams(
            dimension_semantics=("arbitrary",),
            vmem_limit_bytes=32 * 1024 * 1024),
    )(x2, t2, tail)
    return out[0, 0]


def focal_loss_ref(inputs, targets, alpha=0.8, gamma=2):
    """Pure-JAX reference mirroring the PyTorch module."""
    p = jax.nn.sigmoid(inputs.reshape(-1).astype(jnp.float32))
    t = targets.reshape(-1).astype(jnp.float32)
    logsm = jax.nn.log_softmax(p)
    bce = -jnp.sum(t * logsm)
    bce_exp = jnp.exp(-bce)
    return alpha * (1.0 - bce_exp) ** gamma * bce


if __name__ == "__main__":
    key = jax.random.PRNGKey(0)
    k_in, k_tgt = jax.random.split(key)

    # NCHW, as the PyTorch module would receive from a segmentation head.
    inputs = jax.random.normal(k_in, (2, 4, 16, 16), dtype=jnp.float32)
    targets = (jax.random.uniform(k_tgt, (2, 4, 16, 16)) > 0.5).astype(jnp.float32)

    out = focal_loss(inputs, targets)
    out = jax.block_until_ready(out)

    ref = focal_loss_ref(inputs, targets)
    assert jnp.allclose(out, ref, rtol=1e-4, atol=1e-4), (out, ref)

    print("KERNEL_OK")
</pallas_src>

<mosaic_0001>
module attributes {stable_mosaic.version = 11 : i64} {
  func.func @_focal_kernel(%arg0: i32, %arg1: memref<16x128xf32, #tpu.memory_space<vmem>>, %arg2: memref<16x128xf32, #tpu.memory_space<vmem>>, %arg3: memref<3xf32, #tpu.memory_space<smem>>, %arg4: memref<1x1xf32, #tpu.memory_space<vmem>>, %arg5: memref<8x128xf32, #tpu.memory_space<vmem>>, %arg6: memref<8x128xf32, #tpu.memory_space<vmem>>, %arg7: memref<8x128xf32, #tpu.memory_space<vmem>>) attributes {dimension_semantics = [#tpu.dimension_semantics<arbitrary>], iteration_bounds = array<i64: 1>, scalar_prefetch = 0 : i64, scratch_operands = 3 : i64, tpu.core_type = #tpu.core_type<tc>, window_params = [{transform_indices = @transform_0, window_bounds = array<i64: 16, 128>}, {transform_indices = @transform_1, window_bounds = array<i64: 16, 128>}, {transform_indices = @transform_2, window_bounds = array<i64: 3>}, {pipeline_mode = #tpu.pipeline_mode<synchronous>, transform_indices = @transform_3, window_bounds = array<i64: 1, 1>}]} {
    %c0_i32 = arith.constant 0 : i32
    %0 = arith.cmpi eq, %arg0, %c0_i32 : i32
    %1 = arith.extui %0 : i1 to i32
    %c0_i32_0 = arith.constant 0 : i32
    %2 = arith.cmpi ne, %1, %c0_i32_0 : i32
    scf.if %2 {
      %cst_24 = arith.constant 0.000000e+00 : f32
      %34 = vector.broadcast %cst_24 : f32 to vector<8x128xf32>
      %c0_25 = arith.constant 0 : index
      %c0_26 = arith.constant 0 : index
      %35 = vector.load %arg5[%c0_25, %c0_26] : memref<8x128xf32, #tpu.memory_space<vmem>>, vector<8x128xf32>
      tpu.vector_store %arg5[%c0_25, %c0_26], %34 {strides = array<i32>} : memref<8x128xf32, #tpu.memory_space<vmem>>, vector<8x128xf32>,
      %cst_27 = arith.constant 0.000000e+00 : f32
      %36 = vector.broadcast %cst_27 : f32 to vector<8x128xf32>
      %c0_28 = arith.constant 0 : index
      %c0_29 = arith.constant 0 : index
      %37 = vector.load %arg6[%c0_28, %c0_29] : memref<8x128xf32, #tpu.memory_space<vmem>>, vector<8x128xf32>
      tpu.vector_store %arg6[%c0_28, %c0_29], %36 {strides = array<i32>} : memref<8x128xf32, #tpu.memory_space<vmem>>, vector<8x128xf32>,
      %cst_30 = arith.constant 0.000000e+00 : f32
      %38 = vector.broadcast %cst_30 : f32 to vector<8x128xf32>
      %c0_31 = arith.constant 0 : index
      %c0_32 = arith.constant 0 : index
      %39 = vector.load %arg7[%c0_31, %c0_32] : memref<8x128xf32, #tpu.memory_space<vmem>>, vector<8x128xf32>
      tpu.vector_store %arg7[%c0_31, %c0_32], %38 {strides = array<i32>} : memref<8x128xf32, #tpu.memory_space<vmem>>, vector<8x128xf32>,
    } else {
    }
    %c0 = arith.constant 0 : index
    %c0_1 = arith.constant 0 : index
    %3 = vector.load %arg1[%c0, %c0_1] : memref<16x128xf32, #tpu.memory_space<vmem>>, vector<16x128xf32>
    %c0_2 = arith.constant 0 : index
    %c0_3 = arith.constant 0 : index
    %4 = vector.load %arg2[%c0_2, %c0_3] : memref<16x128xf32, #tpu.memory_space<vmem>>, vector<16x128xf32>
    %cst = arith.constant 5.000000e-01 : f32
    %5 = vector.broadcast %cst : f32 to vector<16x128xf32>
    %6 = arith.mulf %5, %3 : vector<16x128xf32>
    %7 = math.tanh %6 : vector<16x128xf32>
    %cst_4 = arith.constant 5.000000e-01 : f32
    %8 = vector.broadcast %cst_4 : f32 to vector<16x128xf32>
    %9 = arith.mulf %8, %7 : vector<16x128xf32>
    %cst_5 = arith.constant 5.000000e-01 : f32
    %10 = vector.broadcast %cst_5 : f32 to vector<16x128xf32>
    %11 = arith.addf %9, %10 : vector<16x128xf32>
    %cst_6 = arith.constant 1.000000e+00 : f32
    %12 = vector.broadcast %cst_6 : f32 to vector<16x128xf32>
    %13 = arith.subf %11, %12 : vector<16x128xf32>
    %14 = math.exp %13 : vector<16x128xf32>
    %15 = arith.mulf %4, %11 : vector<16x128xf32>
    %c0_7 = arith.constant 0 : index
    %c0_8 = arith.constant 0 : index
    %16 = vector.load %arg5[%c0_7, %c0_8] : memref<8x128xf32, #tpu.memory_space<vmem>>, vector<8x128xf32>
    %17 = vector.shape_cast %14 : vector<16x128xf32> to vector<2x8x128xf32>
    %cst_9 = arith.constant dense<0.000000e+00> : vector<8x128xf32>
    %18 = vector.multi_reduction <add>, %17, %cst_9 [0] : vector<2x8x128xf32> to vector<8x128xf32>
    %19 = arith.addf %16, %18 : vector<8x128xf32>
    %c0_10 = arith.constant 0 : index
    %c0_11 = arith.constant 0 : index
    %20 = vector.load %arg5[%c0_10, %c0_11] : memref<8x128xf32, #tpu.memory_space<vmem>>, vector<8x128xf32>
    tpu.vector_store %arg5[%c0_10, %c0_11], %19 {strides = array<i32>} : memref<8x128xf32, #tpu.memory_space<vmem>>, vector<8x128xf32>,
    %c0_12 = arith.constant 0 : index
    %c0_13 = arith.constant 0 : index
    %21 = vector.load %arg6[%c0_12, %c0_13] : memref<8x128xf32, #tpu.memory_space<vmem>>, vector<8x128xf32>
    %22 = vector.shape_cast %15 : vector<16x128xf32> to vector<2x8x128xf32>
    %cst_14 = arith.constant dense<0.000000e+00> : vector<8x128xf32>
    %23 = vector.multi_reduction <add>, %22, %cst_14 [0] : vector<2x8x128xf32> to vector<8x128xf32>
    %24 = arith.addf %21, %23 : vector<8x128xf32>
    %c0_15 = arith.constant 0 : index
    %c0_16 = arith.constant 0 : index
    %25 = vector.load %arg6[%c0_15, %c0_16] : memref<8x128xf32, #tpu.memory_space<vmem>>, vector<8x128xf32>
    tpu.vector_store %arg6[%c0_15, %c0_16], %24 {strides = array<i32>} : memref<8x128xf32, #tpu.memory_space<vmem>>, vector<8x128xf32>,
    %c0_17 = arith.constant 0 : index
    %c0_18 = arith.constant 0 : index
    %26 = vector.load %arg7[%c0_17, %c0_18] : memref<8x128xf32, #tpu.memory_space<vmem>>, vector<8x128xf32>
    %27 = vector.shape_cast %4 : vector<16x128xf32> to vector<2x8x128xf32>
    %cst_19 = arith.constant dense<0.000000e+00> : vector<8x128xf32>
    %28 = vector.multi_reduction <add>, %27, %cst_19 [0] : vector<2x8x128xf32> to vector<8x128xf32>
    %29 = arith.addf %26, %28 : vector<8x128xf32>
    %c0_20 = arith.constant 0 : index
    %c0_21 = arith.constant 0 : index
    %30 = vector.load %arg7[%c0_20, %c0_21] : memref<8x128xf32, #tpu.memory_space<vmem>>, vector<8x128xf32>
    tpu.vector_store %arg7[%c0_20, %c0_21], %29 {strides = array<i32>} : memref<8x128xf32, #tpu.memory_space<vmem>>, vector<8x128xf32>,
    %c0_i32_22 = arith.constant 0 : i32
    %31 = arith.cmpi eq, %arg0, %c0_i32_22 : i32
    %32 = arith.extui %31 : i1 to i32
    %c0_i32_23 = arith.constant 0 : i32
    %33 = arith.cmpi ne, %32, %c0_i32_23 : i32
    scf.if %33 {
      %c0_24 = arith.constant 0 : index
      %34 = memref.load %arg3[%c0_24] : memref<3xf32, #tpu.memory_space<smem>>
      %c0_25 = arith.constant 0 : index
      %c0_26 = arith.constant 0 : index
      %35 = vector.load %arg5[%c0_25, %c0_26] : memref<8x128xf32, #tpu.memory_space<vmem>>, vector<8x128xf32>
      %cst_27 = arith.constant dense<0.000000e+00> : vector<128xf32>
      %36 = vector.multi_reduction <add>, %35, %cst_27 [0] : vector<8x128xf32> to vector<128xf32>
      %37 = vector.shape_cast %36 : vector<128xf32> to vector<1x128xf32>
      %cst_28 = arith.constant dense<0.000000e+00> : vector<1xf32>
      %38 = vector.multi_reduction <add>, %37, %cst_28 [1] : vector<1x128xf32> to vector<1xf32>
      %39 = vector.shape_cast %38 : vector<1xf32> to vector<1x1xf32>
      %40 = vector.broadcast %34 : f32 to vector<1x1xf32>
      %41 = arith.addf %39, %40 : vector<1x1xf32>
      %c1 = arith.constant 1 : index
      %42 = memref.load %arg3[%c1] : memref<3xf32, #tpu.memory_space<smem>>
      %c0_29 = arith.constant 0 : index
      %c0_30 = arith.constant 0 : index
      %43 = vector.load %arg6[%c0_29, %c0_30] : memref<8x128xf32, #tpu.memory_space<vmem>>, vector<8x128xf32>
      %cst_31 = arith.constant dense<0.000000e+00> : vector<128xf32>
      %44 = vector.multi_reduction <add>, %43, %cst_31 [0] : vector<8x128xf32> to vector<128xf32>
      %45 = vector.shape_cast %44 : vector<128xf32> to vector<1x128xf32>
      %cst_32 = arith.constant dense<0.000000e+00> : vector<1xf32>
      %46 = vector.multi_reduction <add>, %45, %cst_32 [1] : vector<1x128xf32> to vector<1xf32>
      %47 = vector.shape_cast %46 : vector<1xf32> to vector<1x1xf32>
      %48 = vector.broadcast %42 : f32 to vector<1x1xf32>
      %49 = arith.addf %47, %48 : vector<1x1xf32>
      %c2 = arith.constant 2 : index
      %50 = memref.load %arg3[%c2] : memref<3xf32, #tpu.memory_space<smem>>
      %c0_33 = arith.constant 0 : index
      %c0_34 = arith.constant 0 : index
      %51 = vector.load %arg7[%c0_33, %c0_34] : memref<8x128xf32, #tpu.memory_space<vmem>>, vector<8x128xf32>
      %cst_35 = arith.constant dense<0.000000e+00> : vector<128xf32>
      %52 = vector.multi_reduction <add>, %51, %cst_35 [0] : vector<8x128xf32> to vector<128xf32>
      %53 = vector.shape_cast %52 : vector<128xf32> to vector<1x128xf32>
      %cst_36 = arith.constant dense<0.000000e+00> : vector<1xf32>
      %54 = vector.multi_reduction <add>, %53, %cst_36 [1] : vector<1x128xf32> to vector<1xf32>
      %55 = vector.shape_cast %54 : vector<1xf32> to vector<1x1xf32>
      %56 = vector.broadcast %50 : f32 to vector<1x1xf32>
      %57 = arith.addf %55, %56 : vector<1x1xf32>
      %58 = math.log %41 : vector<1x1xf32>
      %cst_37 = arith.constant 1.000000e+00 : f32
      %59 = vector.broadcast %cst_37 : f32 to vector<1x1xf32>
      %60 = arith.addf %59, %58 : vector<1x1xf32>
      %61 = arith.mulf %60, %57 : vector<1x1xf32>
      %62 = arith.subf %61, %49 : vector<1x1xf32>
      %cst_38 = arith.constant 0.000000e+00 : f32
      %63 = vector.broadcast %cst_38 : f32 to vector<1x1xf32>
      %64 = arith.subf %63, %62 : vector<1x1xf32>
      %65 = math.exp %64 : vector<1x1xf32>
      %cst_39 = arith.constant 1.000000e+00 : f32
      %66 = vector.broadcast %cst_39 : f32 to vector<1x1xf32>
      %67 = arith.subf %66, %65 : vector<1x1xf32>
      %68 = arith.mulf %67, %67 : vector<1x1xf32>
      %cst_40 = arith.constant 8.000000e-01 : f32
      %69 = vector.broadcast %cst_40 : f32 to vector<1x1xf32>
      %70 = arith.mulf %69, %68 : vector<1x1xf32>
      %71 = arith.mulf %70, %62 : vector<1x1xf32>
      %c0_41 = arith.constant 0 : index
      %c0_42 = arith.constant 0 : index
      %72 = vector.load %arg4[%c0_41, %c0_42] : memref<1x1xf32, #tpu.memory_space<vmem>>, vector<1x1xf32>
      tpu.vector_store %arg4[%c0_41, %c0_42], %71 {strides = array<i32>} : memref<1x1xf32, #tpu.memory_space<vmem>>, vector<1x1xf32>,
    } else {
    }
    return
  }
  func.func @transform_0(%arg0: i32) -> (i32, i32) {
    %c0_i32 = arith.constant 0 : i32
    %c0_i32_0 = arith.constant 0 : i32
    return %arg0, %c0_i32 : i32, i32
  }
  func.func @transform_1(%arg0: i32) -> (i32, i32) {
    %c0_i32 = arith.constant 0 : i32
    %c0_i32_0 = arith.constant 0 : i32
    return %arg0, %c0_i32 : i32, i32
  }
  func.func @transform_2(%arg0: i32) -> i32 {
    %c0_i32 = arith.constant 0 : i32
    %c0_i32_0 = arith.constant 0 : i32
    return %c0_i32 : i32
  }
  func.func @transform_3(%arg0: i32) -> (i32, i32) {
    %c0_i32 = arith.constant 0 : i32
    %c0_i32_0 = arith.constant 0 : i32
    %c0_i32_1 = arith.constant 0 : i32
    return %c0_i32, %c0_i32_0 : i32, i32
  }
}

</mosaic_0001>

<llo_original>
// kernel: tpu_custom_call.1
$region0: #{tpu_custom_call.1}
  #allocation0 [shape = 'u32[]', space=smem, size = 0x4, offset = 0x4, fixed_abs, tag = 'smem constant byte address 0x4 - core index']
  #allocation1 [shape = 'u32[144,128]{1,0:T(1,128)}', space=vmem, size = 0x12000, scoped, tag = 'internal scratch']
  #allocation2 [shape = 'f32[8,128]{1,0:T(8,128)}', space=vmem, size = 0x1000, scoped, tag = 'scratch operand']
  #allocation3 [shape = 'f32[8,128]{1,0:T(8,128)}', space=vmem, size = 0x1000, scoped, tag = 'scratch operand']
  #allocation4 [shape = 'f32[8,128]{1,0:T(8,128)}', space=vmem, size = 0x1000, scoped, tag = 'scratch operand']
  %s0 = inlined_call_operand.hbm [shape: f32[16,128], index: 0, kind: input, shape index: {}]
  %s1 = inlined_call_operand.hbm [shape: f32[16,128], index: 1, kind: input, shape index: {}]
  %s2 = inlined_call_operand.vmem [shape: f32[3], index: 2, kind: input, shape index: {}]
  %s3 = inlined_call_operand.hbm [shape: f32[1,1], index: 3, kind: output, shape index: {}]
  %s4 = sld [smem:[#allocation0]]
  $region42: #{tpu_custom_call.1} parent=0
    _
  %s6 = ssub.s32 1, %s4
  %s7 = scalar_select 0, %s6, %s4
  $region1: #{tpu_custom_call.1} parent=0
    #allocation5 [shape = 'u8[8192]{0}', space=vmem, size = 0x2000, scoped, tag = 'input window, operand 0, single buffered']
    #allocation6 [shape = 's32[1]{0}', space=sflag, size = 0x4, scoped, tag = 'scoped memory for tpu_custom_call.1']
    #allocation7 [shape = 's32[1]{0}', space=sflag, size = 0x4, scoped, tag = 'scoped memory for tpu_custom_call.1']
    #allocation8 [shape = 's32[1]{0}', space=sflag, size = 0x4, scoped, tag = 'scoped memory for tpu_custom_call.1']
    #allocation9 [shape = 'u8[8192]{0}', space=vmem, size = 0x2000, scoped, tag = 'input window, operand 1, single buffered']
    #allocation10 [shape = 's32[1]{0}', space=sflag, size = 0x4, scoped, tag = 'scoped memory for tpu_custom_call.1']
    #allocation11 [shape = 'u8[512]{0}', space=smem, size = 0x200, scoped, tag = 'input window, operand 2, single buffered']
    #allocation12 [shape = 'u8[512]{0}', space=vmem, size = 0x400, scoped, tag = 'output window, operand 0, single buffered']
    %8 = vsyncpa [#allocation6], 0
    %9 = vsyncpa [#allocation10], 0
    %10 = vsyncpa [#allocation8], 0
    %11 = vsyncpa [#allocation7], 0
    // Predicated region
    $region2: #{tpu_custom_call.1} parent=1 // pred_check
      _
    $region3: #{tpu_custom_call.1} parent=1 // pred_check_branch
      %13 = sbr.rel (0) target = $region5
    $region4: #{tpu_custom_call.1} parent=1 // pred_region
      %s15 = ssub.s32 256, 256
      %16 = vsyncadd [#allocation6], %s15
      %s17 = sshll.u32 [#allocation5], 4
      %s18 = int_to_ptr.vmem [resolvable:$true] %s17
      %23 = dma.hbm_to_vmem [thread:$0]  %s0, 256, %s18, [#allocation6], 128, 128, 8
    $region5: #{tpu_custom_call.1} parent=1 // pred_fallthru
      _
    // Predicated region
    $region6: #{tpu_custom_call.1} parent=1 // pred_check
      _
    $region7: #{tpu_custom_call.1} parent=1 // pred_check_branch
      %25 = sbr.rel (0) target = $region9
    $region8: #{tpu_custom_call.1} parent=1 // pred_region
      %s27 = ssub.s32 256, 256
      %28 = vsyncadd [#allocation10], %s27
      %s29 = sshll.u32 [#allocation9], 4
      %s30 = int_to_ptr.vmem [resolvable:$true] %s29
      %35 = dma.hbm_to_vmem [thread:$0]  %s1, 256, %s30, [#allocation10], 128, 128, 8
    $region9: #{tpu_custom_call.1} parent=1 // pred_fallthru
      _
    // Predicated region
    $region10: #{tpu_custom_call.1} parent=1 // pred_check
      _
    $region11: #{tpu_custom_call.1} parent=1 // pred_check_branch
      %37 = sbr.rel (0) target = $region13
    $region12: #{tpu_custom_call.1} parent=1 // pred_region
      %s39 = ssub.s32 16, 16
      %40 = vsyncadd [#allocation8], %s39
      %s42 = sshll.u32 %s2, 4
      %s43 = int_to_ptr.vmem [resolvable:$true] %s42
      %45 = dma.vmem_to_smem %s43, 16, [#allocation11], [#allocation8]
    $region13: #{tpu_custom_call.1} parent=1 // pred_fallthru
      _
    // Predicated region
    $region14: #{tpu_custom_call.1} parent=1 // pred_check
      _
    $region15: #{tpu_custom_call.1} parent=1 // pred_check_branch
      %47 = sbr.rel (0) target = $region17
    $region16: #{tpu_custom_call.1} parent=1 // pred_region
      %48 = dma.done [#allocation6], 256
    $region17: #{tpu_custom_call.1} parent=1 // pred_fallthru
      _
    // Predicated region
    $region18: #{tpu_custom_call.1} parent=1 // pred_check
      _
    $region19: #{tpu_custom_call.1} parent=1 // pred_check_branch
      %50 = sbr.rel (0) target = $region21
    $region20: #{tpu_custom_call.1} parent=1 // pred_region
      %51 = dma.done [#allocation10], 256
    $region21: #{tpu_custom_call.1} parent=1 // pred_fallthru
      _
    // Predicated region
    $region22: #{tpu_custom_call.1} parent=1 // pred_check
      _
    $region23: #{tpu_custom_call.1} parent=1 // pred_check_branch
      %53 = sbr.rel (0) target = $region25
    $region24: #{tpu_custom_call.1} parent=1 // pred_region
      %54 = dma.done [#allocation8], 16
    $region25: #{tpu_custom_call.1} parent=1 // pred_fallthru
      _
    %55 = sfence
    %p56 = scmp.eq.s32.totalorder 0, 0
    // Predicated region
    $region26: #{tpu_custom_call.1} parent=1 // pred_check
      %p57 = pneg %p56
    $region27: #{tpu_custom_call.1} parent=1 // pred_check_branch
      %59 = sbr.rel (%p57) target = $region29
    $region28: #{tpu_custom_call.1} parent=1 // pred_region
      %60 = vst [vmem:[#allocation2] sm:$0xff] 0.0
      %61 = vst [vmem:[#allocation3] sm:$0xff] 0.0
      %62 = vst [vmem:[#allocation4] sm:$0xff] 0.0
    $region29: #{tpu_custom_call.1} parent=1 // pred_fallthru
      _
    %v63 = vld [vmem:[#allocation5] sm:$0xff]
    %v64 = vld [vmem:[#allocation5 + $0x8] sm:$0xff]
    %v65 = vld [vmem:[#allocation9] sm:$0xff]
    %v66 = vld [vmem:[#allocation9 + $0x8] sm:$0xff]
    %v67 = vmul.f32 %v63, 0.5
    %v68 = vmul.f32 %v64, 0.5
    %v69 = vtanh.pop %v67
    %v70 = vtanh.pop %v68
    %v71 = vmul.f32 %v69, 0.5
    %v72 = vmul.f32 %v70, 0.5
    %v73 = vadd.f32 %v71, 0.5
    %v74 = vadd.f32 %v72, 0.5
    %v75 = vsub.f32 %v73, 1.0
    %v76 = vsub.f32 %v74, 1.0
    %v77 = vmul.f32 %v75, 1.442695
    %v78 = vpow.pop %v77
    %v79 = vmul.f32 %v76, 1.442695
    %v80 = vpow.pop %v79
    %v81 = vmul.f32 %v65, %v73
    %v82 = vmul.f32 %v66, %v74
    %v83 = vld [vmem:[#allocation2] sm:$0xff]
    %v84 = vadd.f32 %v78, %v80
    %v85 = vadd.f32 %v83, %v84
    %86 = vst [vmem:[#allocation2] sm:$0xff] %v85
    %v87 = vld [vmem:[#allocation3] sm:$0xff]
    %v88 = vadd.f32 %v81, %v82
    %v89 = vadd.f32 %v87, %v88
    %90 = vst [vmem:[#allocation3] sm:$0xff] %v89
    %v91 = vld [vmem:[#allocation4] sm:$0xff]
    %v92 = vadd.f32 %v65, %v66
    %v93 = vadd.f32 %v91, %v92
    %94 = vst [vmem:[#allocation4] sm:$0xff] %v93
    // Predicated region
    $region30: #{tpu_custom_call.1} parent=1 // pred_check
      %p95 = pneg %p56
    $region31: #{tpu_custom_call.1} parent=1 // pred_check_branch
      %97 = sbr.rel (%p95) target = $region33
    $region32: #{tpu_custom_call.1} parent=1 // pred_region
      %s98 = sld [smem:[#allocation11]]
      %v99 = vld [vmem:[#allocation2] sm:$0xff]
      %v100 = vrot.slane %v99, 4
      %v101 = vadd.f32 %v99, %v100
      %v102 = vrot.slane %v101, 2
      %v103 = vadd.f32 %v101, %v102
      %v104 = vrot.slane %v103, 1
      %v105 = vadd.f32 %v103, %v104
      %106 = vadd.xlane.f32.xlu0 %v105
      %v107 = vpop.xlane.xlu0 %106
      %v108 = vstv %s98
      %v109 = vadd.f32 %v107, %v108
      %s110 = sld [smem:[#allocation11 + $0x1]]
      %v111 = vld [vmem:[#allocation3] sm:$0xff]
      %v112 = vrot.slane %v111, 4
      %v113 = vadd.f32 %v111, %v112
      %v114 = vrot.slane %v113, 2
      %v115 = vadd.f32 %v113, %v114
      %v116 = vrot.slane %v115, 1
      %v117 = vadd.f32 %v115, %v116
      %118 = vadd.xlane.f32.xlu0 %v117
      %v119 = vpop.xlane.xlu0 %118
      %v120 = vstv %s110
      %v121 = vadd.f32 %v119, %v120
      %s122 = sld [smem:[#allocation11 + $0x2]]
      %v123 = vld [vmem:[#allocation4] sm:$0xff]
      %v124 = vrot.slane %v123, 4
      %v125 = vadd.f32 %v123, %v124
      %v126 = vrot.slane %v125, 2
      %v127 = vadd.f32 %v125, %v126
      %v128 = vrot.slane %v127, 1
      %v129 = vadd.f32 %v127, %v128
      %130 = vadd.xlane.f32.xlu0 %v129
      %v131 = vpop.xlane.xlu0 %130
      %v132 = vstv %s122
      %v133 = vadd.f32 %v131, %v132
      %v134 = vlog2.pop %v109
      %v135 = vmul.f32 %v134, 0.6931472
      %v136 = vadd.f32 %v135, 1.0
      %v137 = vmul.f32 %v136, %v133
      %v138 = vsub.f32 %v137, %v121
      %v139 = vsub.f32 0.0, %v138
      %v140 = vmul.f32 %v139, 1.442695
      %v141 = vpow.pop %v140
      %v142 = vsub.f32 1.0, %v141
      %v143 = vmul.f32 %v142, %v142
      %v144 = vmul.f32 %v143, 0.8
      %v145 = vmul.f32 %v144, %v138
      %vm146 = vcmask 0
      %147 = vst.msk [vmem:[#allocation12] sm:$0x1] %vm146, %v145
    $region33: #{tpu_custom_call.1} parent=1 // pred_fallthru
      _
    // Predicated region
    $region34: #{tpu_custom_call.1} parent=1 // pred_check
      _
    $region35: #{tpu_custom_call.1} parent=1 // pred_check_branch
      %149 = sbr.rel (0) target = $region37
    $region36: #{tpu_custom_call.1} parent=1 // pred_region
      %s151 = ssub.s32 16, 16
      %152 = vsyncadd [#allocation7], %s151
      %s154 = sshll.u32 [#allocation12], 4
      %s155 = int_to_ptr.vmem [resolvable:$true] %s154
      %157 = dma.vmem_to_hbm [thread:$0]  %s155, 16, %s3, [#allocation7]
    $region37: #{tpu_custom_call.1} parent=1 // pred_fallthru
      _
    // Predicated region
    $region38: #{tpu_custom_call.1} parent=1 // pred_check
      _
    $region39: #{tpu_custom_call.1} parent=1 // pred_check_branch
      %159 = sbr.rel (0) target = $region41
    $region40: #{tpu_custom_call.1} parent=1 // pred_region
      %160 = dma.done [#allocation7], 16
    $region41: #{tpu_custom_call.1} parent=1 // pred_fallthru
      _
    %161 = vsyncpa [#allocation6], 1
    %162 = vsyncpa [#allocation10], 1
    %163 = vsyncpa [#allocation7], 1
    %164 = vsyncpa [#allocation8], 1

</llo_original>
